<compile_context>
chip_gen: v5e
topology: v5e:2x2
jax: 0.10.0
libtpu: 0.0.40
codegen_flags: <defaults>
</compile_context>

<pallas_src>
import functools
import math

import jax
import jax.numpy as jnp
from jax.experimental import pallas as pl
from jax.experimental.pallas import tpu as pltpu


_MIN_SEQ_STEPS = 4          # keep the pipeline busy / megacore-shardable on small inputs
_FALLBACK_VMEM_LIMIT = 32 * 1024 * 1024


def _build_pe(d_model: int, max_len: int = 5000, dtype=jnp.float32) -> jnp.ndarray:
    """Replicates the PyTorch __init__ buffer (shape (max_len, 1, d_model)).

    Odd d_model is guarded (cos columns truncated to floor(d_model/2)); for even
    d_model this is bit-identical to the PyTorch buffer.
    """
    position = jnp.arange(0, max_len, dtype=jnp.float32)[:, None]            # (max_len, 1)
    div_term = jnp.exp(jnp.arange(0, d_model, 2, dtype=jnp.float32)
                       * (-jnp.log(10000.0) / d_model))                      # (ceil(D/2),)
    ang = position * div_term                                                 # (max_len, ceil(D/2))
    pe = jnp.zeros((max_len, d_model), dtype=jnp.float32)
    pe = pe.at[:, 0::2].set(jnp.sin(ang))
    pe = pe.at[:, 1::2].set(jnp.cos(ang)[:, : d_model // 2])
    return pe[:, None, :].astype(dtype)      # unsqueeze(0).transpose(0,1) -> (max_len, 1, D)


def _round_down_mult(x: int, m: int) -> int:
    return (x // m) * m


def _vmem_limit_bytes() -> int:
    """Generation-aware scoped-VMEM budget: half of physical, clamped to [32, 64] MiB."""
    try:
        cap = int(pltpu.get_tpu_info().vmem_capacity_bytes)
    except Exception:                                   # query unavailable -> conservative
        cap = 2 * _FALLBACK_VMEM_LIMIT
    return int(min(64 * 1024 * 1024, max(32 * 1024 * 1024, cap // 2)))


def _target_block_bytes(vmem_limit: int) -> int:
    """~4 MiB blocks on 32 MiB budgets (v7x), ~8 MiB on 64 MiB budgets (v5e/v6e)."""
    return int(min(8 * 1024 * 1024, max(4 * 1024 * 1024, vmem_limit // 8)))


def _choose_tiles(S: int, B: int, D: int, itemsize: int, target_block_bytes: int):
    """Pick (seq_tile, batch_tile) so the x block is ~target bytes, sublane/lane dense."""
    # --- batch (lane) tiling: only split when even a ts=8 full-width row blows budget ---
    bt = B
    if 8 * B * D * itemsize > target_block_bytes and B > 1:
        g = math.gcd(D, 128)
        bt_unit = 128 // g                  # smallest batch count giving 128-divisible lanes
        if bt_unit < B:
            bt_fit = max(bt_unit, target_block_bytes // max(8 * D * itemsize, 1))
            bt = max(bt_unit, _round_down_mult(bt_fit, bt_unit))
            bt = min(bt, max(bt_unit, _round_down_mult(B, bt_unit)))
        # else: cannot split below B with lane-dense blocks; keep bt = B.

    # --- seq (sublane) tiling ---
    row_bytes = bt * D * itemsize
    ts = max(8, _round_down_mult(target_block_bytes // max(row_bytes, 1), 8))
    if S > 8:
        # Ensure >= _MIN_SEQ_STEPS grid steps when possible (pipelining / megacore).
        ts_cap = max(8, _round_down_mult(pl.cdiv(S, _MIN_SEQ_STEPS), 8))
        ts = min(ts, ts_cap, _round_down_mult(S, 8))
    else:
        ts = S                              # tiny inputs: single full-extent block (legal)
    return ts, bt


def _pe_add_kernel(x_ref, pe_ref, o_ref, *, d_model: int, batches_per_block: int):
    # x_ref / o_ref: (ts, bt*D), pe_ref: (ts, D)
    pe_blk = pe_ref[...]                                     # loaded once, reused per batch
    for b in range(batches_per_block):                       # static slices = free Ref views
        sl = slice(b * d_model, (b + 1) * d_model)
        o_ref[:, sl] = x_ref[:, sl] + pe_blk


def positional_encoding_forward(x: jnp.ndarray, pe: jnp.ndarray, *,
                                seq_tile: int | None = None,
                                batch_tile: int | None = None,
                                donate_x: bool = False) -> jnp.ndarray:
    """x: (S, B, D); pe: (max_len, 1, D) buffer (or a pre-cast (max_len, D) table).

    Returns x + pe[:S] broadcast over batch.  For best per-call cost, build the pe
    table already in x.dtype at model init so the slice/cast below const-folds.
    """
    S, B, D = x.shape

    # Narrow pe stream: (S, D) in x.dtype.
    # NOTE: PyTorch would promote half-precision x to f32 here; we intentionally keep
    # x.dtype for bandwidth (documented divergence, bit-identical for f32 inputs).
    pe2 = pe.reshape(pe.shape[0], -1)[:S]
    if pe2.dtype != x.dtype:
        pe2 = pe2.astype(x.dtype)

    # Lane-dense 2D view of x; collapsing the two minor dims is layout-free.
    x2 = x.reshape(S, B * D)

    vmem_limit = _vmem_limit_bytes()
    target = _target_block_bytes(vmem_limit)
    ts_auto, bt_auto = _choose_tiles(S, B, D, x.dtype.itemsize, target)
    ts = seq_tile if seq_tile is not None else ts_auto
    bt = batch_tile if batch_tile is not None else bt_auto
    assert bt == B or (bt * D) % 128 == 0, "batch_tile must keep lane width 128-divisible"

    grid = (pl.cdiv(S, ts), pl.cdiv(B, bt))

    out2 = pl.pallas_call(
        functools.partial(_pe_add_kernel, d_model=D, batches_per_block=bt),
        out_shape=jax.ShapeDtypeStruct((S, B * D), x.dtype),
        grid_spec=pltpu.PrefetchScalarGridSpec(
            num_scalar_prefetch=0,
            grid=grid,
            in_specs=[
                pl.BlockSpec((ts, bt * D), lambda i, j: (i, j)),   # x slab
                pl.BlockSpec((ts, D), lambda i, j: (i, 0)),        # narrow pe stream
            ],
            out_specs=pl.BlockSpec((ts, bt * D), lambda i, j: (i, j)),
        ),
        compiler_params=pltpu.CompilerParams(
            dimension_semantics=("parallel", "parallel"),          # megacore-shardable
            vmem_limit_bytes=vmem_limit,
        ),
        input_output_aliases=({0: 0} if donate_x else {}),
    )(x2, pe2)

    return out2.reshape(S, B, D)


if __name__ == "__main__":
    # Small shapes consistent with the forward: (seq, batch, d_model).
    S, B, D = 64, 2, 128
    max_len = 256

    key = jax.random.PRNGKey(0)
    x = jax.random.normal(key, (S, B, D), dtype=jnp.float32)
    pe = _build_pe(D, max_len=max_len, dtype=jnp.float32)

    # Reference in plain JAX (same math as the PyTorch forward).
    ref = x + pe[:S]

    # 1) Auto-derived tiles.
    out_auto = jax.block_until_ready(positional_encoding_forward(x, pe))
    # 2) Forced small seq tile -> multi-step pipelined grid path.
    out_seq = jax.block_until_ready(positional_encoding_forward(x, pe, seq_tile=16))
    # 3) Forced batch tiling -> exercises the 2D grid / lane-tiled path.
    out_bt = jax.block_until_ready(
        positional_encoding_forward(x, pe, seq_tile=16, batch_tile=1))

    assert out_auto.shape == (S, B, D)
    assert jnp.allclose(out_auto, ref, atol=1e-6, rtol=1e-6)
    assert jnp.allclose(out_seq, ref, atol=1e-6, rtol=1e-6)
    assert jnp.allclose(out_bt, ref, atol=1e-6, rtol=1e-6)

    print("KERNEL_OK")
</pallas_src>

<mosaic_0001>
module attributes {stable_mosaic.version = 11 : i64} {
  func.func @_pe_add_kernel(%arg0: i32, %arg1: i32, %arg2: memref<16x256xf32, #tpu.memory_space<vmem>>, %arg3: memref<16x128xf32, #tpu.memory_space<vmem>>, %arg4: memref<16x256xf32, #tpu.memory_space<vmem>>) attributes {dimension_semantics = [#tpu.dimension_semantics<parallel>, #tpu.dimension_semantics<parallel>], iteration_bounds = array<i64: 4, 1>, scalar_prefetch = 0 : i64, scratch_operands = 0 : i64, tpu.core_type = #tpu.core_type<tc>, window_params = [{transform_indices = @transform_0, window_bounds = array<i64: 16, 256>}, {transform_indices = @transform_1, window_bounds = array<i64: 16, 128>}, {transform_indices = @transform_2, window_bounds = array<i64: 16, 256>}]} {
    %c0 = arith.constant 0 : index
    %c0_0 = arith.constant 0 : index
    %0 = vector.load %arg3[%c0, %c0_0] : memref<16x128xf32, #tpu.memory_space<vmem>>, vector<16x128xf32>
    %c0_1 = arith.constant 0 : index
    %c0_2 = arith.constant 0 : index
    %1 = vector.load %arg2[%c0_1, %c0_2] : memref<16x256xf32, #tpu.memory_space<vmem>>, vector<16x128xf32>
    %2 = arith.addf %1, %0 : vector<16x128xf32>
    %c0_3 = arith.constant 0 : index
    %c0_4 = arith.constant 0 : index
    %3 = vector.load %arg4[%c0_3, %c0_4] : memref<16x256xf32, #tpu.memory_space<vmem>>, vector<16x128xf32>
    tpu.vector_store %arg4[%c0_3, %c0_4], %2 {strides = array<i32>} : memref<16x256xf32, #tpu.memory_space<vmem>>, vector<16x128xf32>,
    %c0_5 = arith.constant 0 : index
    %c128 = arith.constant 128 : index
    %4 = vector.load %arg2[%c0_5, %c128] : memref<16x256xf32, #tpu.memory_space<vmem>>, vector<16x128xf32>
    %5 = arith.addf %4, %0 : vector<16x128xf32>
    %c0_6 = arith.constant 0 : index
    %c128_7 = arith.constant 128 : index
    %6 = vector.load %arg4[%c0_6, %c128_7] : memref<16x256xf32, #tpu.memory_space<vmem>>, vector<16x128xf32>
    tpu.vector_store %arg4[%c0_6, %c128_7], %5 {strides = array<i32>} : memref<16x256xf32, #tpu.memory_space<vmem>>, vector<16x128xf32>,
    return
  }
  func.func @transform_0(%arg0: i32, %arg1: i32) -> (i32, i32) {
    %c0_i32 = arith.constant 0 : i32
    return %arg0, %arg1 : i32, i32
  }
  func.func @transform_1(%arg0: i32, %arg1: i32) -> (i32, i32) {
    %c0_i32 = arith.constant 0 : i32
    %c0_i32_0 = arith.constant 0 : i32
    return %arg0, %c0_i32 : i32, i32
  }
  func.func @transform_2(%arg0: i32, %arg1: i32) -> (i32, i32) {
    %c0_i32 = arith.constant 0 : i32
    return %arg0, %arg1 : i32, i32
  }
}

</mosaic_0001>

<llo_original>
// kernel: tpu_custom_call.1
$region0: #{tpu_custom_call.1}
  #allocation0 [shape = 'u32[]', space=smem, size = 0x4, offset = 0x4, fixed_abs, tag = 'smem constant byte address 0x4 - core index']
  #allocation1 [shape = 'u32[72,128]{1,0:T(1,128)}', space=vmem, size = 0x9000, scoped, tag = 'internal scratch']
  %s0 = inlined_call_operand.hbm [shape: f32[64,256], index: 0, kind: input, shape index: {}]
  %s1 = inlined_call_operand.hbm [shape: f32[64,128], index: 1, kind: input, shape index: {}]
  %s2 = inlined_call_operand.hbm [shape: f32[64,256], index: 2, kind: output, shape index: {}]
  %s3 = sld [smem:[#allocation0]]
  $region49: #{tpu_custom_call.1} parent=0
    _
  %s5 = ssub.s32 1, %s3
  %s6 = scalar_select 0, %s5, %s3
  $region1: #{tpu_custom_call.1} parent=0
    #allocation2 [shape = 'u8[32768]{0}', space=vmem, size = 0x8000, scoped, tag = 'input window, operand 0']
    #allocation3 [shape = 's32[2]{0}', space=sflag, size = 0x8, scoped, tag = 'scoped memory for tpu_custom_call.1']
    #allocation4 [shape = 's32[2]{0}', space=sflag, size = 0x8, scoped, tag = 'scoped memory for tpu_custom_call.1']
    #allocation5 [shape = 'u8[16384]{0}', space=vmem, size = 0x4000, scoped, tag = 'input window, operand 1']
    #allocation6 [shape = 's32[2]{0}', space=sflag, size = 0x8, scoped, tag = 'scoped memory for tpu_custom_call.1']
    #allocation7 [shape = 'u8[32768]{0}', space=vmem, size = 0x8000, scoped, tag = 'output window, operand 0']
    %7 = vsyncpa [#allocation3], 0
    %s8 = scalar_lea.sflag [#allocation3], 1
    %9 = vsyncpa %s8, 0
    %10 = vsyncpa [#allocation6], 0
    %s11 = scalar_lea.sflag [#allocation6], 1
    %12 = vsyncpa %s11, 0
    %13 = vsyncpa [#allocation4], 0
    %s14 = scalar_lea.sflag [#allocation4], 1
    %15 = vsyncpa %s14, 0
    loop: start=0, step=1, limit=6
    $region2: #{tpu_custom_call.1} parent=1 // loop_pre_header
      _
    $region3: #{tpu_custom_call.1} parent=1 // loop_header
      %s17 = sphi 0, %s21
      %p18 = scmp.ge.s32.totalorder %s17, 6
      %s24 = sphi 0, %s36
      %s25 = sphi 0, %s32
      %s26 = sphi 0, %s24
      %s27 = sphi 0, %s25
      %s28 = sphi 0, %s26
      %s29 = sphi 0, %s27
      %s41 = sphi 0, %s43
      %s44 = sphi 0, %s41
      %s45 = sphi 0, %s44
      %s61 = sphi 0, %s45
      %s67 = sphi 0, %s69
      %s70 = sphi 0, %s67
      %s71 = sphi 0, %s70
      %s87 = sphi 0, %s71
      %s95 = sphi 0, %s97
      %s98 = sphi 0, %s95
      %s99 = sphi 0, %s98
      %s115 = sphi 0, %s99
    $region4: #{tpu_custom_call.1} parent=1 // loop_header_branch
      %20 = sbr.rel (%p18) target = $region8
    $region5: #{tpu_custom_call.1} parent=1 // loop_body
      %s22 = ssub.s32 %s17, 1
      %s23 = ssub.s32 %s17, 2
      %s30 = sadd.s32 1, %s25
      %p31 = scmp.ge.s32.totalorder %s30, 1
      %s32 = scalar_select %p31, 0, %s30
      %s33 = sadd.s32 1, %s24
      %s34 = scalar_select %p31, %s33, %s24
      %p35 = scmp.ge.s32.totalorder %s34, 4
      %s36 = scalar_select %p35, 0, %s34
      %s37 = ssub.s32 %s24, %s36
      %s38 = ssub.s32 %s25, %s32
      %s39 = sor.u32 %s37, %s38
      %p40 = scmp.eq.s32.totalorder %s39, 0
      %s42 = sadd.s32 %s41, 1
      %s43 = scalar_select %p40, %s41, %s42
      %p46 = pneg %p40
      %p47 = scmp.eq.s32.totalorder %s17, 3
      %p48 = por %p46, %p47
      %p49 = scmp.ne.s32.totalorder %s41, %s44
      %p50 = scmp.eq.s32.totalorder %s17, 0
      %p51 = por %p49, %p50
      %p52 = scmp.ne.s32.totalorder %s41, %s44
      %p53 = scmp.eq.s32.totalorder %s22, 3
      %p54 = por %p52, %p53
      %p55 = scmp.ne.s32.totalorder %s44, %s45
      %p56 = scmp.eq.s32.totalorder %s22, 0
      %p57 = por %p55, %p56
      %p58 = scmp.ne.s32.totalorder %s44, %s45
      %p59 = scmp.eq.s32.totalorder %s23, 3
      %p60 = por %p58, %p59
      %p62 = scmp.ne.s32.totalorder %s45, %s61
      %p63 = scmp.eq.s32.totalorder %s23, 0
      %p64 = por %p62, %p63
      %s65 = ssub.s32 %s24, %s36
      %p66 = scmp.eq.s32.totalorder %s65, 0
      %s68 = sadd.s32 %s67, 1
      %s69 = scalar_select %p66, %s67, %s68
      %p72 = pneg %p66
      %p73 = scmp.eq.s32.totalorder %s17, 3
      %p74 = por %p72, %p73
      %p75 = scmp.ne.s32.totalorder %s67, %s70
      %p76 = scmp.eq.s32.totalorder %s17, 0
      %p77 = por %p75, %p76
      %p78 = scmp.ne.s32.totalorder %s67, %s70
      %p79 = scmp.eq.s32.totalorder %s22, 3
      %p80 = por %p78, %p79
      %p81 = scmp.ne.s32.totalorder %s70, %s71
      %p82 = scmp.eq.s32.totalorder %s22, 0
      %p83 = por %p81, %p82
      %p84 = scmp.ne.s32.totalorder %s70, %s71
      %p85 = scmp.eq.s32.totalorder %s23, 3
      %p86 = por %p84, %p85
      %p88 = scmp.ne.s32.totalorder %s71, %s87
      %p89 = scmp.eq.s32.totalorder %s23, 0
      %p90 = por %p88, %p89
      %s91 = ssub.s32 %s24, %s36
      %s92 = ssub.s32 %s25, %s32
      %s93 = sor.u32 %s91, %s92
      %p94 = scmp.eq.s32.totalorder %s93, 0
      %s96 = sadd.s32 %s95, 1
      %s97 = scalar_select %p94, %s95, %s96
      %p100 = pneg %p94
      %p101 = scmp.eq.s32.totalorder %s17, 3
      %p102 = por %p100, %p101
      %p103 = scmp.ne.s32.totalorder %s95, %s98
      %p104 = scmp.eq.s32.totalorder %s17, 0
      %p105 = por %p103, %p104
      %p106 = scmp.ne.s32.totalorder %s95, %s98
      %p107 = scmp.eq.s32.totalorder %s22, 3
      %p108 = por %p106, %p107
      %p109 = scmp.ne.s32.totalorder %s98, %s99
      %p110 = scmp.eq.s32.totalorder %s22, 0
      %p111 = por %p109, %p110
      %p112 = scmp.ne.s32.totalorder %s98, %s99
      %p113 = scmp.eq.s32.totalorder %s23, 3
      %p114 = por %p112, %p113
      %p116 = scmp.ne.s32.totalorder %s99, %s115
      %p117 = scmp.eq.s32.totalorder %s23, 0
      %p118 = por %p116, %p117
      %p119 = scmp.le.s32.totalorder 1, %s17
      %p120 = scmp.lt.s32.totalorder %s17, 5
      %p121 = pnand %p119, %p120
      %p122 = pneg %p121
      // Predicated region
      $region9: #{tpu_custom_call.1} parent=5 // pred_check
        _
      $region10: #{tpu_custom_call.1} parent=5 // pred_check_branch
        %124 = sbr.rel (%p121) target = $region12
      $region11: #{tpu_custom_call.1} parent=5 // pred_region
        %s125 = ssub.s32 %s17, 1
      $region12: #{tpu_custom_call.1} parent=5 // pred_fallthru
        _
      %p126 = scmp.lt.s32.totalorder %s17, 4
      // Predicated region
      $region13: #{tpu_custom_call.1} parent=5 // pred_check
        %p127 = pneg %p126
      $region14: #{tpu_custom_call.1} parent=5 // pred_check_branch
        %129 = sbr.rel (%p127) target = $region16
      $region15: #{tpu_custom_call.1} parent=5 // pred_region
        // Predicated region
        $region17: #{tpu_custom_call.1} parent=15 // pred_check
          %p130 = pneg %p51
        $region18: #{tpu_custom_call.1} parent=15 // pred_check_branch
          %132 = sbr.rel (%p130) target = $region20
        $region19: #{tpu_custom_call.1} parent=15 // pred_region
          %s133 = sand.u32 %s41, 1
          %s134 = scalar_lea.sflag [#allocation3], %s133
          %s135 = sand.u32 %s41, 1
          %s136 = smul.addr %s135, 32
          %s137 = scalar_lea.vmem [#allocation2], %s136
          %s138 = smul.u32 2, %s24
          %s139 = smul.u32 2, %s25
          %141 = vsyncadd %s134, 0
          %s142 = smul.addr %s138, 2
          %s143 = sadd.s32 %s139, %s142
          %s144 = smul.addr %s143, 8
          %s145 = scalar_lea.hbm %s0, %s144
          %s146 = sshll.u32 %s145, 4
          %s147 = int_to_ptr.hbm [resolvable:$true] %s146
          %s148 = sshll.u32 %s137, 4
          %s149 = int_to_ptr.vmem [resolvable:$true] %s148
          %154 = dma.hbm_to_vmem [thread:$0]  %s147, 512, %s149, %s134, 256, 256, 16
        $region20: #{tpu_custom_call.1} parent=15 // pred_fallthru
          _
        // Predicated region
        $region21: #{tpu_custom_call.1} parent=15 // pred_check
          %p155 = pneg %p77
        $region22: #{tpu_custom_call.1} parent=15 // pred_check_branch
          %157 = sbr.rel (%p155) target = $region24
        $region23: #{tpu_custom_call.1} parent=15 // pred_region
          %s158 = sand.u32 %s67, 1
          %s159 = scalar_lea.sflag [#allocation6], %s158
          %s160 = sand.u32 %s67, 1
          %s161 = smul.addr %s160, 16
          %s162 = scalar_lea.vmem [#allocation5], %s161
          %s163 = smul.u32 2, %s24
          %165 = vsyncadd %s159, 0
          %s166 = smul.addr %s163, 8
          %s167 = scalar_lea.hbm %s1, %s166
          %s168 = sshll.u32 %s167, 4
          %s169 = int_to_ptr.hbm [resolvable:$true] %s168
          %s170 = sshll.u32 %s162, 4
          %s171 = int_to_ptr.vmem [resolvable:$true] %s170
          %176 = dma.hbm_to_vmem [thread:$0]  %s169, 256, %s171, %s159, 128, 128, 8
        $region24: #{tpu_custom_call.1} parent=15 // pred_fallthru
          _
      $region16: #{tpu_custom_call.1} parent=5 // pred_fallthru
        _
      %p177 = scmp.le.s32.totalorder 1, %s17
      %p178 = scmp.lt.s32.totalorder %s17, 5
      %p179 = pnand %p177, %p178
      %p180 = pneg %p179
      // Predicated region
      $region25: #{tpu_custom_call.1} parent=5 // pred_check
        _
      $region26: #{tpu_custom_call.1} parent=5 // pred_check_branch
        %182 = sbr.rel (%p179) target = $region28
      $region27: #{tpu_custom_call.1} parent=5 // pred_region
        %s183 = ssub.s32 %s17, 1
        %s184 = sand.u32 %s44, 1
        %s185 = scalar_lea.sflag [#allocation3], %s184
        %s186 = sand.u32 %s44, 1
        %s187 = smul.addr %s186, 32
        %s188 = scalar_lea.vmem [#allocation2], %s187
        // Predicated region
        $region29: #{tpu_custom_call.1} parent=27 // pred_check
          %p189 = pneg %p57
        $region30: #{tpu_custom_call.1} parent=27 // pred_check_branch
          %191 = sbr.rel (%p189) target = $region32
        $region31: #{tpu_custom_call.1} parent=27 // pred_region
          %193 = dma.done %s185, 512
        $region32: #{tpu_custom_call.1} parent=27 // pred_fallthru
          _
        %s194 = sand.u32 %s70, 1
        %s195 = scalar_lea.sflag [#allocation6], %s194
        %s196 = sand.u32 %s70, 1
        %s197 = smul.addr %s196, 16
        %s198 = scalar_lea.vmem [#allocation5], %s197
        // Predicated region
        $region33: #{tpu_custom_call.1} parent=27 // pred_check
          %p199 = pneg %p83
        $region34: #{tpu_custom_call.1} parent=27 // pred_check_branch
          %201 = sbr.rel (%p199) target = $region36
        $region35: #{tpu_custom_call.1} parent=27 // pred_region
          %203 = dma.done %s195, 256
        $region36: #{tpu_custom_call.1} parent=27 // pred_fallthru
          _
        %s204 = sand.u32 %s44, 1
        %s205 = scalar_lea.sflag [#allocation3], %s204
        %s206 = sand.u32 %s44, 1
        %s207 = smul.addr %s206, 32
        %s208 = scalar_lea.vmem [#allocation2], %s207
        %p209 = pneg %p57
        %p210 = pneg %p54
        %s211 = sand.u32 %s70, 1
        %s212 = scalar_lea.sflag [#allocation6], %s211
        %s213 = sand.u32 %s70, 1
        %s214 = smul.addr %s213, 16
        %s215 = scalar_lea.vmem [#allocation5], %s214
        %p216 = pneg %p83
        %p217 = pneg %p80
        %p218 = pneg %p111
        %p219 = pneg %p108
        %s220 = sand.u32 %s98, 1
        %s221 = scalar_lea.sflag [#allocation4], %s220
        %s222 = sand.u32 %s98, 1
        %s223 = smul.addr %s222, 32
        %s224 = scalar_lea.vmem [#allocation7], %s223
        %s225 = smul.u32 2, %s26
        %s226 = smul.u32 2, %s27
        %s227 = smul.u32 2, %s26
        %s228 = smul.u32 2, %s26
        %s229 = smul.u32 2, %s27
        %v230 = vld [vmem:[%s198] sm:$0xff]
        %v231 = vld [vmem:[%s198 + $0x8] sm:$0xff]
        %v232 = vld [vmem:[%s188] sm:$0xff]
        %v233 = vld [vmem:[%s188 + $0x10] sm:$0xff]
        %v234 = vadd.f32 %v232, %v230
        %v235 = vadd.f32 %v233, %v231
        %236 = vst [vmem:[%s224] sm:$0xff] %v234
        %237 = vst [vmem:[%s224 + $0x10] sm:$0xff] %v235
        %v238 = vld [vmem:[%s188 + $0x8] sm:$0xff]
        %v239 = vld [vmem:[%s188 + $0x18] sm:$0xff]
        %v240 = vadd.f32 %v238, %v230
        %v241 = vadd.f32 %v239, %v231
        %242 = vst [vmem:[%s224 + $0x8] sm:$0xff] %v240
        %243 = vst [vmem:[%s224 + $0x18] sm:$0xff] %v241
        %s244 = sand.u32 %s98, 1
        %s245 = scalar_lea.sflag [#allocation4], %s244
        %s246 = sand.u32 %s98, 1
        %s247 = smul.addr %s246, 32
        %s248 = scalar_lea.vmem [#allocation7], %s247
        // Predicated region
        $region37: #{tpu_custom_call.1} parent=27 // pred_check
          %p249 = pneg %p108
        $region38: #{tpu_custom_call.1} parent=27 // pred_check_branch
          %251 = sbr.rel (%p249) target = $region40
        $region39: #{tpu_custom_call.1} parent=27 // pred_region
          %s252 = smul.u32 2, %s26
          %s253 = smul.u32 2, %s27
          %255 = vsyncadd %s245, 0
          %s256 = smul.addr %s252, 2
          %s257 = sadd.s32 %s253, %s256
          %s258 = smul.addr %s257, 8
          %s259 = scalar_lea.hbm %s2, %s258
          %s260 = sshll.u32 %s248, 4
          %s261 = int_to_ptr.vmem [resolvable:$true] %s260
          %s262 = sshll.u32 %s259, 4
          %s263 = int_to_ptr.hbm [resolvable:$true] %s262
          %268 = dma.vmem_to_hbm [thread:$0]  %s261, 512, %s263, %s245, 256, 256, 16
        $region40: #{tpu_custom_call.1} parent=27 // pred_fallthru
          _
      $region28: #{tpu_custom_call.1} parent=5 // pred_fallthru
        _
      %p269 = scmp.le.s32.totalorder 2, %s17
      // Predicated region
      $region41: #{tpu_custom_call.1} parent=5 // pred_check
        %p270 = pneg %p269
      $region42: #{tpu_custom_call.1} parent=5 // pred_check_branch
        %272 = sbr.rel (%p270) target = $region44
      $region43: #{tpu_custom_call.1} parent=5 // pred_region
        %s273 = ssub.s32 %s17, 2
        // Predicated region
        $region45: #{tpu_custom_call.1} parent=43 // pred_check
          %p274 = pneg %p114
        $region46: #{tpu_custom_call.1} parent=43 // pred_check_branch
          %276 = sbr.rel (%p274) target = $region48
        $region47: #{tpu_custom_call.1} parent=43 // pred_region
          %s277 = sand.u32 %s99, 1
          %s278 = scalar_lea.sflag [#allocation4], %s277
          %s279 = sand.u32 %s99, 1
          %s280 = smul.addr %s279, 32
          %s281 = scalar_lea.vmem [#allocation7], %s280
          %283 = dma.done %s278, 512
        $region48: #{tpu_custom_call.1} parent=43 // pred_fallthru
          _
      $region44: #{tpu_custom_call.1} parent=5 // pred_fallthru
        _
    $region6: #{tpu_custom_call.1} parent=1 // loop_footer
      %s21 = sadd.s32 1, %s17
    $region7: #{tpu_custom_call.1} parent=1 // loop_footer_branch
      %16 = sbr.rel target = $region3
    $region8: #{tpu_custom_call.1} parent=1 // loop_exit
      _
    %284 = vsyncpa [#allocation3], 1
    %s285 = scalar_lea.sflag [#allocation3], 1
    %286 = vsyncpa %s285, 1
    %287 = vsyncpa [#allocation6], 1
    %s288 = scalar_lea.sflag [#allocation6], 1
    %289 = vsyncpa %s288, 1
    %290 = vsyncpa [#allocation4], 1
    %s291 = scalar_lea.sflag [#allocation4], 1
    %292 = vsyncpa %s291, 1

</llo_original>
